<compile_context>
chip_gen: v7x
topology: tpu7x:2x2x1
jax: 0.10.0
libtpu: 0.0.40
codegen_flags: <defaults>
</compile_context>

<pallas_src>
import functools
import inspect

import jax
import jax.numpy as jnp
from jax.experimental import pallas as pl
from jax.experimental.pallas import tpu as pltpu

_LANES = 128
_SUBLANES = 8
_MAX_TILE_ROWS = 4096                 # 4096*128*4B = 2 MiB per f32 block
_VMEM_LIMIT_BYTES = 32 * 1024 * 1024  # safe on v5e/v6e (128 MiB) and v7x (64 MiB)

try:
    _HAS_BUFFERED = (hasattr(pl, "Buffered")
                     and "pipeline_mode" in inspect.signature(pl.BlockSpec).parameters)
except Exception:  # pragma: no cover - defensive; fall back to double buffering
    _HAS_BUFFERED = False


# ---------------------------------------------------------------------------
# Kernels
# ---------------------------------------------------------------------------
def _elem_kernel(*refs, has_weight, scale):
    """Element-wise weighted squared error (reduction='none' path).

    Inputs are loaded in their native dtype and cast to f32 in VMEM; the
    loss_weight scale and the cast to the output dtype are fused here so the
    wrapper adds no extra HBM passes.
    """
    if has_weight:
        p_ref, t_ref, w_ref, o_ref = refs
    else:
        p_ref, t_ref, o_ref = refs
        w_ref = None
    d = p_ref[...].astype(jnp.float32) - t_ref[...].astype(jnp.float32)
    l = d * d
    if has_weight:
        l = l * w_ref[...].astype(jnp.float32)
    if scale != 1.0:
        l = l * jnp.float32(scale)
    o_ref[...] = l.astype(o_ref.dtype)


def _sum_kernel(*refs, has_weight, tile_rows, n_inner, total_rows, needs_mask):
    """Sum-only weighted squared error (reduction='mean'/'sum' path).

    Grid is (n_outer, n_inner): the outer axis is 'parallel' (megacore
    sharding on v7x), the inner axis is the 'arbitrary' reduction axis.  The
    (1, 8, 128) output block stays resident across the inner axis and holds
    per-lane partial sums; the final cross-lane reduce happens in the wrapper.
    """
    if has_weight:
        p_ref, t_ref, w_ref, s_ref = refs
    else:
        p_ref, t_ref, s_ref = refs
        w_ref = None

    i = pl.program_id(0)  # parallel outer axis
    j = pl.program_id(1)  # arbitrary reduction axis

    @pl.when(j == 0)
    def _():
        s_ref[...] = jnp.zeros_like(s_ref)

    d = p_ref[...].astype(jnp.float32) - t_ref[...].astype(jnp.float32)
    l = d * d
    if has_weight:
        l = l * w_ref[...].astype(jnp.float32)

    if needs_mask:
        # Ragged last block / phantom block: rows >= total_rows hold stale
        # VMEM garbage -> discard with a SELECT (never multiplicative masking,
        # so NaN/Inf garbage cannot poison the accumulator).
        lb = i * n_inner + j  # un-clamped linear block index
        rows = jax.lax.broadcasted_iota(jnp.int32, l.shape, 0) + lb * tile_rows
        l = jnp.where(rows < total_rows, l, 0.0)

    # (tile_rows, 128) -> (8, 128): whole-vreg VPU adds, 1024 parallel partials.
    part = l.reshape(tile_rows // _SUBLANES, _SUBLANES, _LANES).sum(axis=0)
    s_ref[...] += part[None]


# ---------------------------------------------------------------------------
# pallas_call wrappers
# ---------------------------------------------------------------------------
def _run_elem(p2, t2, w2, out_dtype, scale):
    R = p2.shape[0]
    has_weight = w2 is not None
    tile_rows = min(_MAX_TILE_ROWS, R)          # full-dim block when R is small
    grid_n = pl.cdiv(R, tile_rows)

    spec = pl.BlockSpec((tile_rows, _LANES), lambda i: (i, 0))
    in_specs = [spec, spec] + ([spec] if has_weight else [])
    args = (p2, t2) + ((w2,) if has_weight else ())

    return pl.pallas_call(
        functools.partial(_elem_kernel, has_weight=has_weight, scale=float(scale)),
        out_shape=jax.ShapeDtypeStruct((R, _LANES), out_dtype),
        grid_spec=pltpu.PrefetchScalarGridSpec(
            num_scalar_prefetch=0,
            grid=(grid_n,),
            in_specs=in_specs,
            out_specs=spec,
        ),
        compiler_params=pltpu.CompilerParams(
            dimension_semantics=("parallel",),
            vmem_limit_bytes=_VMEM_LIMIT_BYTES,
        ),
    )(*args)


def _run_sum(p2, t2, w2):
    R = p2.shape[0]  # guaranteed >= 8 by the wrapper
    has_weight = w2 is not None
    tile_rows = min(_MAX_TILE_ROWS, (R // _SUBLANES) * _SUBLANES)
    grid_n = pl.cdiv(R, tile_rows)

    # Always split across both v7x TensorCores when there are >=2 blocks.
    n_outer = 2 if grid_n >= 2 else 1
    n_inner = pl.cdiv(grid_n, n_outer)
    needs_mask = (n_outer * n_inner * tile_rows != R)

    def in_map(i, j):
        # Clamp the phantom trailing block (odd grid_n) onto the last real
        # block; the in-kernel row mask zeroes its contribution.
        return (jnp.minimum(i * n_inner + j, grid_n - 1), 0)

    if _HAS_BUFFERED and n_inner >= 3:
        spec = pl.BlockSpec((tile_rows, _LANES), in_map,
                            pipeline_mode=pl.Buffered(3))
    else:
        spec = pl.BlockSpec((tile_rows, _LANES), in_map)
    in_specs = [spec, spec] + ([spec] if has_weight else [])
    args = (p2, t2) + ((w2,) if has_weight else ())

    partials = pl.pallas_call(
        functools.partial(_sum_kernel,
                          has_weight=has_weight,
                          tile_rows=tile_rows,
                          n_inner=n_inner,
                          total_rows=R,
                          needs_mask=needs_mask),
        out_shape=jax.ShapeDtypeStruct((n_outer, _SUBLANES, _LANES), jnp.float32),
        grid_spec=pltpu.PrefetchScalarGridSpec(
            num_scalar_prefetch=0,
            grid=(n_outer, n_inner),
            in_specs=in_specs,
            out_specs=pl.BlockSpec((1, _SUBLANES, _LANES), lambda i, j: (i, 0, 0)),
        ),
        compiler_params=pltpu.CompilerParams(
            dimension_semantics=("parallel", "arbitrary"),
            vmem_limit_bytes=_VMEM_LIMIT_BYTES,
        ),
    )(*args)
    return jnp.sum(partials)


# ---------------------------------------------------------------------------
# Public wrapper: reproduces L2Loss.forward (mmcv weighted_loss semantics)
# ---------------------------------------------------------------------------
def l2_loss_pallas(pred, target, weight=None, reduction="mean",
                   avg_factor=None, loss_weight=1.0):
    assert reduction in ("none", "mean", "sum")
    assert pred.shape == target.shape and pred.size > 0

    orig_shape = pred.shape
    orig_dtype = pred.dtype
    numel = pred.size

    # Weight handling: stream only genuinely full-shape weights (native dtype);
    # fold python scalars into the static scale.
    scale = float(loss_weight)
    w_arr = None
    if weight is not None:
        if isinstance(weight, (int, float)):
            scale *= float(weight)
        else:
            weight = jnp.asarray(weight)
            if weight.shape == orig_shape:
                w_arr = weight
            else:
                # TODO(synk): avoid materializing broadcast (non-full-shape)
                # weights; a stride-0 index_map / SMEM-scalar path would skip
                # this extra HBM stream.
                w_arr = jnp.broadcast_to(weight, orig_shape)

    p_flat = pred.reshape(-1)
    t_flat = target.reshape(-1)
    w_flat = w_arr.reshape(-1) if w_arr is not None else None

    rem = numel % _LANES            # <128-element lane tail (handled in JAX)
    aligned = numel - rem           # 128-aligned prefix (handled by the kernel)

    def _view(x):  # zero-copy reshape when rem == 0, prefix slice otherwise
        y = x if rem == 0 else x[:aligned]
        return y.reshape(aligned // _LANES, _LANES)

    # -------------------------------- reduction='none'
    if reduction == "none":
        pieces = []
        if aligned > 0:
            main = _run_elem(_view(p_flat), _view(t_flat),
                             _view(w_flat) if w_flat is not None else None,
                             orig_dtype, scale)
            pieces.append(main.reshape(-1))
        if rem:
            s = aligned
            dt = p_flat[s:].astype(jnp.float32) - t_flat[s:].astype(jnp.float32)
            lt = dt * dt
            if w_flat is not None:
                lt = lt * w_flat[s:].astype(jnp.float32)
            pieces.append((lt * jnp.float32(scale)).astype(orig_dtype))
        out = pieces[0] if len(pieces) == 1 else jnp.concatenate(pieces)
        # mmcv: avg_factor with reduction='none' leaves the loss untouched.
        return out.reshape(orig_shape)

    # -------------------------------- reduction='mean' / 'sum'
    R = aligned // _LANES
    use_kernel = R >= _SUBLANES     # tiny inputs (<1024 elems) stay in JAX
    tail_start = aligned if use_kernel else 0

    total = jnp.float32(0.0)
    if use_kernel:
        total = _run_sum(_view(p_flat), _view(t_flat),
                         _view(w_flat) if w_flat is not None else None)
    if tail_start < numel:
        dt = (p_flat[tail_start:].astype(jnp.float32)
              - t_flat[tail_start:].astype(jnp.float32))
        lt = dt * dt
        if w_flat is not None:
            lt = lt * w_flat[tail_start:].astype(jnp.float32)
        total = total + jnp.sum(lt)

    if avg_factor is None:
        res = total / jnp.float32(numel) if reduction == "mean" else total
    else:
        if reduction != "mean":
            raise ValueError('avg_factor can not be used with reduction="sum"')
        res = total / jnp.asarray(avg_factor, jnp.float32)
    return jnp.float32(scale) * res


# ---------------------------------------------------------------------------
# Self-test
# ---------------------------------------------------------------------------
if __name__ == "__main__":
    key = jax.random.PRNGKey(0)
    ks = jax.random.split(key, 8)

    # Small dense-prediction style shape.
    shape = (2, 4, 16, 16)
    pred = jax.random.normal(ks[0], shape, dtype=jnp.float32)
    target = jax.random.normal(ks[1], shape, dtype=jnp.float32)
    weight = jax.random.uniform(ks[2], shape, dtype=jnp.float32)

    loss_mean = l2_loss_pallas(pred, target, reduction="mean")
    loss_sum = l2_loss_pallas(pred, target, weight=weight, reduction="sum")
    loss_none = l2_loss_pallas(pred, target, weight=weight, reduction="none")
    loss_avgf = l2_loss_pallas(pred, target, weight=weight, reduction="mean",
                               avg_factor=123.0, loss_weight=2.0)
    loss_wsc = l2_loss_pallas(pred, target, weight=0.5, reduction="mean",
                              loss_weight=3.0)

    # bf16 ingest (native-dtype streaming, f32 accumulate, bf16 'none' output).
    pb = pred.astype(jnp.bfloat16)
    tb = target.astype(jnp.bfloat16)
    loss_bf_mean = l2_loss_pallas(pb, tb, reduction="mean")
    loss_bf_none = l2_loss_pallas(pb, tb, reduction="none")

    # Larger case: multi-block grid, 2-way outer parallel axis, Buffered(3)
    # sum path, ragged last block row mask (R=20488 -> 4096-row tiles).
    mshape = (20488, 128)
    pm = jax.random.normal(ks[3], mshape, dtype=jnp.float32)
    tm = jax.random.normal(ks[4], mshape, dtype=jnp.float32)
    loss_m_mean = l2_loss_pallas(pm, tm, reduction="mean")
    loss_m_none = l2_loss_pallas(pm, tm, reduction="none")

    # Ragged numel (not a multiple of 128): kernel on the aligned prefix
    # (R=15, tile 8, phantom/partial block masked), <128-element tail in JAX.
    pt = pred.reshape(-1)[:2000].reshape(2, 1000)
    tt = target.reshape(-1)[:2000].reshape(2, 1000)
    loss_tail = l2_loss_pallas(pt, tt, reduction="sum")

    # Tiny input (numel < 1024): pure-JAX fallback for the reduction path.
    loss_tiny = l2_loss_pallas(pred.reshape(-1)[:15], target.reshape(-1)[:15],
                               reduction="mean")

    jax.block_until_ready((loss_mean, loss_sum, loss_none, loss_avgf, loss_wsc,
                           loss_bf_mean, loss_bf_none, loss_m_mean,
                           loss_m_none, loss_tail, loss_tiny))

    # Plain-JAX references.
    ref = (pred - target) ** 2
    refm = (pm - tm) ** 2
    refb = (pb.astype(jnp.float32) - tb.astype(jnp.float32)) ** 2
    ok = True
    ok &= bool(jnp.allclose(loss_mean, ref.mean(), rtol=1e-5, atol=1e-5))
    ok &= bool(jnp.allclose(loss_sum, (ref * weight).sum(), rtol=1e-5, atol=1e-4))
    ok &= bool(jnp.allclose(loss_none, ref * weight, rtol=1e-5, atol=1e-5))
    ok &= bool(jnp.allclose(loss_avgf, 2.0 * (ref * weight).sum() / 123.0,
                            rtol=1e-5, atol=1e-4))
    ok &= bool(jnp.allclose(loss_wsc, 3.0 * 0.5 * ref.mean(), rtol=1e-5, atol=1e-5))
    ok &= bool(jnp.allclose(loss_bf_mean, refb.mean(), rtol=1e-3, atol=1e-3))
    ok &= bool(jnp.allclose(loss_bf_none.astype(jnp.float32),
                            refb.astype(jnp.bfloat16).astype(jnp.float32),
                            rtol=2e-2, atol=1e-2))
    ok &= bool(jnp.allclose(loss_m_mean, refm.mean(), rtol=1e-5, atol=1e-5))
    ok &= bool(jnp.allclose(loss_m_none, refm, rtol=1e-5, atol=1e-5))
    ok &= bool(jnp.allclose(loss_tail, ((pt - tt) ** 2).sum(), rtol=1e-5, atol=1e-4))
    ok &= bool(jnp.allclose(
        loss_tiny,
        ((pred.reshape(-1)[:15] - target.reshape(-1)[:15]) ** 2).mean(),
        rtol=1e-5, atol=1e-5))
    assert ok, "mismatch vs reference"
    print("KERNEL_OK")
</pallas_src>

<mosaic_0001>
module attributes {stable_mosaic.version = 11 : i64} {
  func.func @_sum_kernel(%arg0: i32, %arg1: i32, %arg2: memref<16x128xf32, #tpu.memory_space<vmem>>, %arg3: memref<16x128xf32, #tpu.memory_space<vmem>>, %arg4: memref<1x8x128xf32, #tpu.memory_space<vmem>>) attributes {dimension_semantics = [#tpu.dimension_semantics<parallel>, #tpu.dimension_semantics<arbitrary>], iteration_bounds = array<i64: 1, 1>, scalar_prefetch = 0 : i64, scratch_operands = 0 : i64, tpu.core_type = #tpu.core_type<tc>, window_params = [{transform_indices = @transform_0, window_bounds = array<i64: 16, 128>}, {transform_indices = @transform_1, window_bounds = array<i64: 16, 128>}, {transform_indices = @transform_2, window_bounds = array<i64: 1, 8, 128>}]} {
    %c0_i32 = arith.constant 0 : i32
    %0 = arith.cmpi eq, %arg1, %c0_i32 : i32
    %1 = arith.extui %0 : i1 to i32
    %c0_i32_0 = arith.constant 0 : i32
    %2 = arith.cmpi ne, %1, %c0_i32_0 : i32
    scf.if %2 {
      %cst_10 = arith.constant 0.000000e+00 : f32
      %13 = vector.broadcast %cst_10 : f32 to vector<1x8x128xf32>
      %c0_11 = arith.constant 0 : index
      %c0_12 = arith.constant 0 : index
      %c0_13 = arith.constant 0 : index
      %14 = vector.load %arg4[%c0_11, %c0_12, %c0_13] : memref<1x8x128xf32, #tpu.memory_space<vmem>>, vector<1x8x128xf32>
      tpu.vector_store %arg4[%c0_11, %c0_12, %c0_13], %13 {strides = array<i32>} : memref<1x8x128xf32, #tpu.memory_space<vmem>>, vector<1x8x128xf32>,
    } else {
    }
    %c0 = arith.constant 0 : index
    %c0_1 = arith.constant 0 : index
    %3 = vector.load %arg2[%c0, %c0_1] : memref<16x128xf32, #tpu.memory_space<vmem>>, vector<16x128xf32>
    %c0_2 = arith.constant 0 : index
    %c0_3 = arith.constant 0 : index
    %4 = vector.load %arg3[%c0_2, %c0_3] : memref<16x128xf32, #tpu.memory_space<vmem>>, vector<16x128xf32>
    %5 = arith.subf %3, %4 : vector<16x128xf32>
    %6 = arith.mulf %5, %5 : vector<16x128xf32>
    %7 = vector.shape_cast %6 : vector<16x128xf32> to vector<2x8x128xf32>
    %cst = arith.constant dense<0.000000e+00> : vector<8x128xf32>
    %8 = vector.multi_reduction <add>, %7, %cst [0] : vector<2x8x128xf32> to vector<8x128xf32>
    %c0_4 = arith.constant 0 : index
    %c0_5 = arith.constant 0 : index
    %c0_6 = arith.constant 0 : index
    %9 = vector.load %arg4[%c0_4, %c0_5, %c0_6] : memref<1x8x128xf32, #tpu.memory_space<vmem>>, vector<1x8x128xf32>
    %10 = vector.shape_cast %8 : vector<8x128xf32> to vector<1x8x128xf32>
    %11 = arith.addf %9, %10 : vector<1x8x128xf32>
    %c0_7 = arith.constant 0 : index
    %c0_8 = arith.constant 0 : index
    %c0_9 = arith.constant 0 : index
    %12 = vector.load %arg4[%c0_7, %c0_8, %c0_9] : memref<1x8x128xf32, #tpu.memory_space<vmem>>, vector<1x8x128xf32>
    tpu.vector_store %arg4[%c0_7, %c0_8, %c0_9], %11 {strides = array<i32>} : memref<1x8x128xf32, #tpu.memory_space<vmem>>, vector<1x8x128xf32>,
    return
  }
  func.func @transform_0(%arg0: i32, %arg1: i32) -> (i32, i32) {
    %c1_i32 = arith.constant 1 : i32
    %0 = arith.muli %arg0, %c1_i32 : i32
    %1 = arith.addi %0, %arg1 : i32
    %c0_i32 = arith.constant 0 : i32
    %2 = arith.minsi %1, %c0_i32 : i32
    %c0_i32_0 = arith.constant 0 : i32
    %c0_i32_1 = arith.constant 0 : i32
    return %2, %c0_i32_0 : i32, i32
  }
  func.func @transform_1(%arg0: i32, %arg1: i32) -> (i32, i32) {
    %c1_i32 = arith.constant 1 : i32
    %0 = arith.muli %arg0, %c1_i32 : i32
    %1 = arith.addi %0, %arg1 : i32
    %c0_i32 = arith.constant 0 : i32
    %2 = arith.minsi %1, %c0_i32 : i32
    %c0_i32_0 = arith.constant 0 : i32
    %c0_i32_1 = arith.constant 0 : i32
    return %2, %c0_i32_0 : i32, i32
  }
  func.func @transform_2(%arg0: i32, %arg1: i32) -> (i32, i32, i32) {
    %c0_i32 = arith.constant 0 : i32
    %c0_i32_0 = arith.constant 0 : i32
    %c0_i32_1 = arith.constant 0 : i32
    return %arg0, %c0_i32, %c0_i32_0 : i32, i32, i32
  }
}

</mosaic_0001>

<llo_original>
// kernel: tpu_custom_call.1
$region0: #{tpu_custom_call.1}
  #allocation0 [shape = 'u32[]', space=smem, size = 0x4, offset = 0x4, fixed_abs, tag = 'smem constant byte address 0x4 - core index']
  #allocation1 [shape = 'u32[144,128]{1,0:T(1,128)}', space=vmem, size = 0x12000, scoped, tag = 'internal scratch']
  %s0 = inlined_call_operand.hbm [shape: f32[16,128], index: 0, kind: input, shape index: {}]
  %s1 = inlined_call_operand.hbm [shape: f32[16,128], index: 1, kind: input, shape index: {}]
  %s2 = inlined_call_operand.hbm [shape: f32[1,8,128], index: 2, kind: output, shape index: {}]
  %s3 = sld [smem:[#allocation0]]
  $region30: #{tpu_custom_call.1} parent=0
    _
  %s5 = ssub.s32 1, %s3
  %s6 = scalar_select 0, %s5, %s3
  $region1: #{tpu_custom_call.1} parent=0
    #allocation2 [shape = 'u8[8192]{0}', space=vmem, size = 0x2000, scoped, tag = 'input window, operand 0, single buffered']
    #allocation3 [shape = 's32[1]{0}', space=sflag, size = 0x4, scoped, tag = 'scoped memory for tpu_custom_call.1']
    #allocation4 [shape = 's32[1]{0}', space=sflag, size = 0x4, scoped, tag = 'scoped memory for tpu_custom_call.1']
    #allocation5 [shape = 'u8[8192]{0}', space=vmem, size = 0x2000, scoped, tag = 'input window, operand 1, single buffered']
    #allocation6 [shape = 's32[1]{0}', space=sflag, size = 0x4, scoped, tag = 'scoped memory for tpu_custom_call.1']
    #allocation7 [shape = 'u8[4096]{0}', space=vmem, size = 0x1000, scoped, tag = 'output window, operand 0, single buffered']
    %7 = vsyncpa [#allocation3], 0
    %8 = vsyncpa [#allocation6], 0
    %9 = vsyncpa [#allocation4], 0
    // Predicated region
    $region2: #{tpu_custom_call.1} parent=1 // pred_check
      _
    $region3: #{tpu_custom_call.1} parent=1 // pred_check_branch
      %11 = sbr.rel (0) target = $region5
    $region4: #{tpu_custom_call.1} parent=1 // pred_region
      %s12 = sadd.s32 0, 0
      %p13 = scmp.lt.s32.totalorder %s12, 0
      %s14 = scalar_select %p13, %s12, 0
      %s15 = smul.u32 2, %s14
      %s17 = ssub.s32 256, 256
      %18 = vsyncadd [#allocation3], %s17
      %s19 = smul.addr %s15, 128
      %s20 = scalar_lea.hbm %s0, %s19
      %s21 = sshll.u32 [#allocation2], 4
      %s22 = int_to_ptr.vmem [resolvable:$true] %s21
      %27 = dma.hbm_to_vmem [thread:$0]  %s20, 256, %s22, [#allocation3], 128, 128, 8
    $region5: #{tpu_custom_call.1} parent=1 // pred_fallthru
      _
    // Predicated region
    $region6: #{tpu_custom_call.1} parent=1 // pred_check
      _
    $region7: #{tpu_custom_call.1} parent=1 // pred_check_branch
      %29 = sbr.rel (0) target = $region9
    $region8: #{tpu_custom_call.1} parent=1 // pred_region
      %s30 = sadd.s32 0, 0
      %p31 = scmp.lt.s32.totalorder %s30, 0
      %s32 = scalar_select %p31, %s30, 0
      %s33 = smul.u32 2, %s32
      %s35 = ssub.s32 256, 256
      %36 = vsyncadd [#allocation6], %s35
      %s37 = smul.addr %s33, 128
      %s38 = scalar_lea.hbm %s1, %s37
      %s39 = sshll.u32 [#allocation5], 4
      %s40 = int_to_ptr.vmem [resolvable:$true] %s39
      %45 = dma.hbm_to_vmem [thread:$0]  %s38, 256, %s40, [#allocation6], 128, 128, 8
    $region9: #{tpu_custom_call.1} parent=1 // pred_fallthru
      _
    // Predicated region
    $region10: #{tpu_custom_call.1} parent=1 // pred_check
      _
    $region11: #{tpu_custom_call.1} parent=1 // pred_check_branch
      %47 = sbr.rel (0) target = $region13
    $region12: #{tpu_custom_call.1} parent=1 // pred_region
      %48 = dma.done [#allocation3], 256
    $region13: #{tpu_custom_call.1} parent=1 // pred_fallthru
      _
    // Predicated region
    $region14: #{tpu_custom_call.1} parent=1 // pred_check
      _
    $region15: #{tpu_custom_call.1} parent=1 // pred_check_branch
      %50 = sbr.rel (0) target = $region17
    $region16: #{tpu_custom_call.1} parent=1 // pred_region
      %51 = dma.done [#allocation6], 256
    $region17: #{tpu_custom_call.1} parent=1 // pred_fallthru
      _
    %s52 = sadd.s32 0, 0
    %p53 = scmp.lt.s32.totalorder %s52, 0
    %s54 = scalar_select %p53, %s52, 0
    %s55 = smul.u32 2, %s54
    %s56 = sadd.s32 0, 0
    %p57 = scmp.lt.s32.totalorder %s56, 0
    %s58 = scalar_select %p57, %s56, 0
    %s59 = smul.u32 2, %s58
    %p60 = scmp.eq.s32.totalorder 0, 0
    // Predicated region
    $region18: #{tpu_custom_call.1} parent=1 // pred_check
      %p61 = pneg %p60
    $region19: #{tpu_custom_call.1} parent=1 // pred_check_branch
      %63 = sbr.rel (%p61) target = $region21
    $region20: #{tpu_custom_call.1} parent=1 // pred_region
      %64 = vst [vmem:[#allocation7] sm:$0xff] 0.0
    $region21: #{tpu_custom_call.1} parent=1 // pred_fallthru
      _
    %v65 = vld [vmem:[#allocation2] sm:$0xff]
    %v66 = vld [vmem:[#allocation2 + $0x8] sm:$0xff]
    %v67 = vld [vmem:[#allocation5] sm:$0xff]
    %v68 = vld [vmem:[#allocation5 + $0x8] sm:$0xff]
    %v69 = vsub.f32 %v65, %v67
    %v70 = vsub.f32 %v66, %v68
    %v71 = vmul.f32 %v69, %v69
    %v72 = vmul.f32 %v70, %v70
    %v73 = vadd.f32 %v71, %v72
    %v74 = vld [vmem:[#allocation7] sm:$0xff]
    %v75 = vadd.f32 %v74, %v73
    %76 = vst [vmem:[#allocation7] sm:$0xff] %v75
    // Predicated region
    $region22: #{tpu_custom_call.1} parent=1 // pred_check
      _
    $region23: #{tpu_custom_call.1} parent=1 // pred_check_branch
      %78 = sbr.rel (0) target = $region25
    $region24: #{tpu_custom_call.1} parent=1 // pred_region
      %s80 = ssub.s32 128, 128
      %81 = vsyncadd [#allocation4], %s80
      %s83 = sshll.u32 [#allocation7], 4
      %s84 = int_to_ptr.vmem [resolvable:$true] %s83
      %86 = dma.vmem_to_hbm [thread:$0]  %s84, 128, %s2, [#allocation4]
    $region25: #{tpu_custom_call.1} parent=1 // pred_fallthru
      _
    // Predicated region
    $region26: #{tpu_custom_call.1} parent=1 // pred_check
      _
    $region27: #{tpu_custom_call.1} parent=1 // pred_check_branch
      %88 = sbr.rel (0) target = $region29
    $region28: #{tpu_custom_call.1} parent=1 // pred_region
      %89 = dma.done [#allocation4], 128
    $region29: #{tpu_custom_call.1} parent=1 // pred_fallthru
      _
    %90 = vsyncpa [#allocation3], 1
    %91 = vsyncpa [#allocation6], 1
    %92 = vsyncpa [#allocation4], 1

</llo_original>
